<compile_context>
chip_gen: v5e
topology: v5e:2x2
jax: 0.10.0
libtpu: 0.0.40
codegen_flags: <defaults>
</compile_context>

<pallas_src>
import functools

import jax
import jax.numpy as jnp
from jax import lax
from jax.experimental import pallas as pl
from jax.experimental.pallas import tpu as pltpu


# ---------------------------------------------------------------------------
# in-kernel helpers
# ---------------------------------------------------------------------------
def _col_masks(W, L):
    """Lane masks that kill column-wrap contributions of the +/-1 column taps."""
    col = lax.broadcasted_iota(jnp.int32, (1, L), 1) % W
    mask_l = (col > 0).astype(jnp.float32)       # dj=-1 valid only for j >= 1
    mask_r = (col < W - 1).astype(jnp.float32)   # dj=+1 valid only for j <= W-2
    return mask_l, mask_r


def _dw3x3_flat(pad_ref, y, wdw, W, mask_l, mask_r):
    """3x3 depthwise conv (stride 1, zero-pad 1) on the flat (C, H*W) layout.

    pad_ref is a VMEM scratch of width L + 2*W + 2.  Only the (W+1)-lane left
    and right borders are zeroed here (row padding comes from that flat zero
    border); the interior is fully overwritten each call.  Column wrap of the
    +/-1 column taps is removed with two lane-mask multiplies applied once per
    column-tap group.  wdw is (C, 9), tap k = 3*di + dj, BN scale pre-folded.
    """
    C, L = y.shape
    P = W + 1
    zeros_border = jnp.zeros((C, P), jnp.float32)
    pad_ref[0:C, 0:P] = zeros_border
    pad_ref[0:C, P + L:P + L + P] = zeros_border
    pad_ref[0:C, P:P + L] = y

    z_l = jnp.zeros_like(y)
    z_c = jnp.zeros_like(y)
    z_r = jnp.zeros_like(y)
    for a in (-1, 0, 1):
        base = P + a * W
        k = (a + 1) * 3
        z_l = z_l + wdw[:, k + 0:k + 1] * pad_ref[0:C, base - 1:base - 1 + L]
        z_c = z_c + wdw[:, k + 1:k + 2] * pad_ref[0:C, base:base + L]
        z_r = z_r + wdw[:, k + 2:k + 3] * pad_ref[0:C, base + 1:base + 1 + L]
    return z_l * mask_l + z_c + z_r * mask_r


# ---------------------------------------------------------------------------
# Pallas kernels (one fused kernel per stride variant; one image per grid step)
# ---------------------------------------------------------------------------
def _unit_s1_kernel(Cb, W,
                    x_ref, w1_ref, b1_ref, wdw_ref, b2_ref, w2_ref, b3_ref,
                    o_ref, pad_ref):
    """stride==1 unit: x1 passthrough | branch2, fused concat + channel shuffle."""
    L = x_ref.shape[-1]
    mask_l, mask_r = _col_masks(W, L)
    xn = x_ref[0]                                # (2*Cb, L)
    x1 = xn[:Cb]
    x2 = xn[Cb:]
    # 1x1 conv (BN scale folded) + bias + ReLU
    y = jnp.maximum(
        jnp.dot(w1_ref[...], x2, preferred_element_type=jnp.float32)
        + b1_ref[...], 0.0)
    # depthwise 3x3 (BN scale folded) + bias (no ReLU)
    z = _dw3x3_flat(pad_ref, y, wdw_ref[...], W, mask_l, mask_r) + b2_ref[...]
    # 1x1 conv (BN scale folded) + bias + ReLU
    o2 = jnp.maximum(
        jnp.dot(w2_ref[...], z, preferred_element_type=jnp.float32)
        + b3_ref[...], 0.0)
    # channel shuffle (groups=2) == interleave; one lane-dense store of (Cb, 2*Lo)
    o_ref[0] = jnp.concatenate([x1, o2], axis=-1)


def _unit_s2_kernel(W,
                    x_ref, sel_ref,
                    wdw1_ref, c1b1_ref, wp1_ref, c1b2_ref,
                    w1_ref, b1_ref, wdw2_ref, b2_ref, w2_ref, b3_ref,
                    o_ref, pad_ref):
    """stride==2 unit: branch1 | branch2, fused concat + channel shuffle."""
    L = x_ref.shape[-1]
    mask_l, mask_r = _col_masks(W, L)
    S = sel_ref[...]                             # (L, Lo) one-hot stride-2 selector
    xn = x_ref[0]                                # (Cin, L)
    # ---- branch1: dw3x3(stride 2) + BN -> 1x1 + BN + ReLU --------------------
    z1 = _dw3x3_flat(pad_ref, xn, wdw1_ref[...], W, mask_l, mask_r)
    z1 = jnp.dot(z1, S, preferred_element_type=jnp.float32) + c1b1_ref[...]
    o1 = jnp.maximum(
        jnp.dot(wp1_ref[...], z1, preferred_element_type=jnp.float32)
        + c1b2_ref[...], 0.0)
    # ---- branch2: 1x1+BN+ReLU -> dw3x3(stride 2)+BN -> 1x1+BN+ReLU -----------
    y = jnp.maximum(
        jnp.dot(w1_ref[...], xn, preferred_element_type=jnp.float32)
        + b1_ref[...], 0.0)
    z2 = _dw3x3_flat(pad_ref, y, wdw2_ref[...], W, mask_l, mask_r)
    z2 = jnp.dot(z2, S, preferred_element_type=jnp.float32) + b2_ref[...]
    o2 = jnp.maximum(
        jnp.dot(w2_ref[...], z2, preferred_element_type=jnp.float32)
        + b3_ref[...], 0.0)
    # channel shuffle (groups=2) == interleave; one lane-dense store of (Cb, 2*Lo)
    o_ref[0] = jnp.concatenate([o1, o2], axis=-1)


# ---------------------------------------------------------------------------
# wrapper (NCHW in / NCHW out, no transposes)
# ---------------------------------------------------------------------------
def _full_spec(a):
    zeros = (0,) * a.ndim
    return pl.BlockSpec(a.shape, lambda n, _z=zeros: _z)


def inverted_residual_forward(x_nchw, params, stride):
    N, C_in, H, W = x_nchw.shape
    L = H * W
    Ho = (H - 1) // stride + 1
    Wo = (W - 1) // stride + 1
    Lo = Ho * Wo

    p2 = params["branch2"]
    Cb = p2["w1"].shape[0]

    # fold BN (eval-mode) scales into the preceding conv weights (exact algebra)
    w1f = p2["s1"][:, None] * p2["w1"]                        # (Cb, Cin2)
    wdw2f = p2["s2"][:, None] * p2["wdw"].reshape(Cb, 9)      # (Cb, 9)
    w2f = p2["s3"][:, None] * p2["w2"]                        # (Cb, Cb)
    b1 = p2["b1"][:, None]
    b2 = p2["b2"][:, None]
    b3 = p2["b3"][:, None]

    x = x_nchw.astype(jnp.float32).reshape(N, C_in, L)        # free reshape
    grid = (N,)                                               # one image per step
    x_spec = pl.BlockSpec((1, C_in, L), lambda n: (n, 0, 0))
    o_spec = pl.BlockSpec((1, Cb, 2 * Lo), lambda n: (n, 0, 0))
    pad_width = L + 2 * W + 2

    if stride == 1:
        weight_elems = (w1f.size + wdw2f.size + w2f.size
                        + b1.size + b2.size + b3.size)
        need = 4 * (2 * C_in * L + 2 * Cb * 2 * Lo
                    + Cb * pad_width + weight_elems)
        vmem_limit = int(min(max(16 * 2**20, 2 * need), 56 * 2**20))
        flops = int(N * (4 * Cb * Cb * L + 18 * Cb * L))
        bytes_accessed = int(4 * (N * C_in * L + N * Cb * 2 * Lo + weight_elems))
        out = pl.pallas_call(
            functools.partial(_unit_s1_kernel, Cb, W),
            out_shape=jax.ShapeDtypeStruct((N, Cb, 2 * Lo), jnp.float32),
            grid=grid,
            in_specs=[x_spec, _full_spec(w1f), _full_spec(b1),
                      _full_spec(wdw2f), _full_spec(b2),
                      _full_spec(w2f), _full_spec(b3)],
            out_specs=o_spec,
            scratch_shapes=[pltpu.VMEM((Cb, pad_width), jnp.float32)],
            compiler_params=pltpu.CompilerParams(
                dimension_semantics=("parallel",),
                vmem_limit_bytes=vmem_limit),
            cost_estimate=pl.CostEstimate(
                flops=flops, transcendentals=0, bytes_accessed=bytes_accessed),
        )(x, w1f, b1, wdw2f, b2, w2f, b3)
    else:
        p1 = params["branch1"]
        wdw1f = p1["s1"][:, None] * p1["wdw"].reshape(C_in, 9)    # (Cin, 9)
        wp1f = p1["s2"][:, None] * p1["w"]                        # (Cb, Cin)
        c1b1 = p1["b1"][:, None]
        c1b2 = p1["b2"][:, None]
        # one-hot selector picking stride-2 output positions; applied as a
        # matmul in-kernel (no strided gather, no full-res scratch round-trip)
        lo = jnp.arange(Lo)
        rows = 2 * (lo // Wo) * W + 2 * (lo % Wo)
        S = (jnp.arange(L)[:, None] == rows[None, :]).astype(jnp.float32)
        pad_rows = max(C_in, Cb)
        weight_elems = (w1f.size + wdw2f.size + w2f.size + b1.size + b2.size
                        + b3.size + wdw1f.size + wp1f.size + c1b1.size
                        + c1b2.size + S.size)
        need = 4 * (2 * C_in * L + 2 * Cb * 2 * Lo
                    + pad_rows * pad_width + weight_elems)
        vmem_limit = int(min(max(16 * 2**20, 2 * need), 56 * 2**20))
        flops = int(N * (18 * C_in * L + 2 * C_in * L * Lo + 2 * Cb * C_in * Lo
                         + 2 * Cb * C_in * L + 18 * Cb * L + 2 * Cb * L * Lo
                         + 2 * Cb * Cb * Lo))
        bytes_accessed = int(4 * (N * C_in * L + N * Cb * 2 * Lo + weight_elems))
        out = pl.pallas_call(
            functools.partial(_unit_s2_kernel, W),
            out_shape=jax.ShapeDtypeStruct((N, Cb, 2 * Lo), jnp.float32),
            grid=grid,
            in_specs=[x_spec, _full_spec(S),
                      _full_spec(wdw1f), _full_spec(c1b1),
                      _full_spec(wp1f), _full_spec(c1b2),
                      _full_spec(w1f), _full_spec(b1),
                      _full_spec(wdw2f), _full_spec(b2),
                      _full_spec(w2f), _full_spec(b3)],
            out_specs=o_spec,
            scratch_shapes=[pltpu.VMEM((pad_rows, pad_width), jnp.float32)],
            compiler_params=pltpu.CompilerParams(
                dimension_semantics=("parallel",),
                vmem_limit_bytes=vmem_limit),
            cost_estimate=pl.CostEstimate(
                flops=flops, transcendentals=0, bytes_accessed=bytes_accessed),
        )(x, S, wdw1f, c1b1, wp1f, c1b2, w1f, b1, wdw2f, b2, w2f, b3)

    # (N, Cb, 2*Lo) -> (N, 2*Cb, Ho, Wo) is exactly channel_shuffle(concat, 2)
    # and is a free (contiguous) reshape.
    return out.reshape(N, 2 * Cb, Ho, Wo)


# ---------------------------------------------------------------------------
# deterministic parameter init (BatchNorm eval-mode stats folded to scale/bias)
# ---------------------------------------------------------------------------
def _fold_bn(key, c):
    kg, kb, km, kv = jax.random.split(key, 4)
    gamma = 1.0 + 0.1 * jax.random.normal(kg, (c,), jnp.float32)
    beta = 0.1 * jax.random.normal(kb, (c,), jnp.float32)
    mean = 0.1 * jax.random.normal(km, (c,), jnp.float32)
    var = 0.5 + jnp.abs(jax.random.normal(kv, (c,), jnp.float32))
    scale = gamma / jnp.sqrt(var + 1e-5)
    bias = beta - mean * scale
    return scale, bias


def init_params(key, input_c, output_c, stride):
    assert stride in (1, 2)
    assert output_c % 2 == 0
    cb = output_c // 2
    assert stride != 1 or input_c == cb * 2
    cin2 = input_c if stride > 1 else cb
    keys = jax.random.split(key, 10)

    params = {"branch2": dict(
        w1=0.2 * jax.random.normal(keys[0], (cb, cin2), jnp.float32),
        wdw=0.2 * jax.random.normal(keys[2], (cb, 3, 3), jnp.float32),
        w2=0.2 * jax.random.normal(keys[4], (cb, cb), jnp.float32))}
    for name, k in (("1", keys[1]), ("2", keys[3]), ("3", keys[5])):
        s, b = _fold_bn(k, cb)
        params["branch2"]["s" + name] = s
        params["branch2"]["b" + name] = b

    if stride == 2:
        params["branch1"] = dict(
            wdw=0.2 * jax.random.normal(keys[6], (input_c, 3, 3), jnp.float32),
            w=0.2 * jax.random.normal(keys[8], (cb, input_c), jnp.float32))
        s, b = _fold_bn(keys[7], input_c)
        params["branch1"]["s1"], params["branch1"]["b1"] = s, b
        s, b = _fold_bn(keys[9], cb)
        params["branch1"]["s2"], params["branch1"]["b2"] = s, b
    return params


# ---------------------------------------------------------------------------
# pure-JAX reference (for correctness check)
# ---------------------------------------------------------------------------
def _ref_branch2(x, p, stride):
    Cb = p["w1"].shape[0]
    hp = lax.Precision.HIGHEST
    y = jnp.einsum("oc,nchw->nohw", p["w1"], x, precision=hp)
    y = jax.nn.relu(y * p["s1"][None, :, None, None] + p["b1"][None, :, None, None])
    y = lax.conv_general_dilated(
        y, p["wdw"].reshape(Cb, 1, 3, 3),
        window_strides=(stride, stride), padding=((1, 1), (1, 1)),
        dimension_numbers=("NCHW", "OIHW", "NCHW"),
        feature_group_count=Cb, precision=hp)
    y = y * p["s2"][None, :, None, None] + p["b2"][None, :, None, None]
    y = jnp.einsum("oc,nchw->nohw", p["w2"], y, precision=hp)
    return jax.nn.relu(y * p["s3"][None, :, None, None] + p["b3"][None, :, None, None])


def _ref_branch1(x, p):
    C = x.shape[1]
    hp = lax.Precision.HIGHEST
    y = lax.conv_general_dilated(
        x, p["wdw"].reshape(C, 1, 3, 3),
        window_strides=(2, 2), padding=((1, 1), (1, 1)),
        dimension_numbers=("NCHW", "OIHW", "NCHW"),
        feature_group_count=C, precision=hp)
    y = y * p["s1"][None, :, None, None] + p["b1"][None, :, None, None]
    y = jnp.einsum("oc,nchw->nohw", p["w"], y, precision=hp)
    return jax.nn.relu(y * p["s2"][None, :, None, None] + p["b2"][None, :, None, None])


def _channel_shuffle_ref(x, groups=2):
    n, c, h, w = x.shape
    x = x.reshape(n, groups, c // groups, h, w)
    x = jnp.transpose(x, (0, 2, 1, 3, 4))
    return x.reshape(n, c, h, w)


def ref_forward(x_nchw, params, stride):
    if stride == 1:
        cb = x_nchw.shape[1] // 2
        o1 = x_nchw[:, :cb]
        o2 = _ref_branch2(x_nchw[:, cb:], params["branch2"], 1)
    else:
        o1 = _ref_branch1(x_nchw, params["branch1"])
        o2 = _ref_branch2(x_nchw, params["branch2"], 2)
    return _channel_shuffle_ref(jnp.concatenate([o1, o2], axis=1), groups=2)


# ---------------------------------------------------------------------------
if __name__ == "__main__":
    key = jax.random.PRNGKey(0)
    kx1, kx2, kp1, kp2 = jax.random.split(key, 4)

    # stride=1 unit: input_c == output_c == 8 (branch_features = 4), 16x16 spatial
    x_s1 = jax.random.normal(kx1, (2, 8, 16, 16), jnp.float32)   # NCHW
    p_s1 = init_params(kp1, input_c=8, output_c=8, stride=1)
    out_s1 = jax.block_until_ready(inverted_residual_forward(x_s1, p_s1, 1))
    ref_s1 = ref_forward(x_s1, p_s1, 1)
    assert out_s1.shape == (2, 8, 16, 16)
    assert jnp.allclose(out_s1, ref_s1, atol=1e-3, rtol=1e-3), \
        float(jnp.max(jnp.abs(out_s1 - ref_s1)))

    # stride=2 unit: input_c=8, output_c=16, spatial downsampled to 8x8
    x_s2 = jax.random.normal(kx2, (2, 8, 16, 16), jnp.float32)   # NCHW
    p_s2 = init_params(kp2, input_c=8, output_c=16, stride=2)
    out_s2 = jax.block_until_ready(inverted_residual_forward(x_s2, p_s2, 2))
    ref_s2 = ref_forward(x_s2, p_s2, 2)
    assert out_s2.shape == (2, 16, 8, 8)
    assert jnp.allclose(out_s2, ref_s2, atol=1e-3, rtol=1e-3), \
        float(jnp.max(jnp.abs(out_s2 - ref_s2)))

    print("KERNEL_OK")
</pallas_src>

<mosaic_0001>
module attributes {stable_mosaic.version = 11 : i64} {
  func.func @_unit_s1_kernel(%arg0: i32, %arg1: memref<1x8x256xf32, #tpu.memory_space<vmem>>, %arg2: memref<4x4xf32, #tpu.memory_space<vmem>>, %arg3: memref<4x1xf32, #tpu.memory_space<vmem>>, %arg4: memref<4x9xf32, #tpu.memory_space<vmem>>, %arg5: memref<4x1xf32, #tpu.memory_space<vmem>>, %arg6: memref<4x4xf32, #tpu.memory_space<vmem>>, %arg7: memref<4x1xf32, #tpu.memory_space<vmem>>, %arg8: memref<1x4x512xf32, #tpu.memory_space<vmem>>, %arg9: memref<4x290xf32, #tpu.memory_space<vmem>>) attributes {dimension_semantics = [#tpu.dimension_semantics<parallel>], iteration_bounds = array<i64: 2>, scalar_prefetch = 0 : i64, scratch_operands = 1 : i64, tpu.core_type = #tpu.core_type<tc>, window_params = [{transform_indices = @transform_0, window_bounds = array<i64: 1, 8, 256>}, {pipeline_mode = #tpu.pipeline_mode<synchronous>, transform_indices = @transform_1, window_bounds = array<i64: 4, 4>}, {pipeline_mode = #tpu.pipeline_mode<synchronous>, transform_indices = @transform_2, window_bounds = array<i64: 4, 1>}, {pipeline_mode = #tpu.pipeline_mode<synchronous>, transform_indices = @transform_3, window_bounds = array<i64: 4, 9>}, {pipeline_mode = #tpu.pipeline_mode<synchronous>, transform_indices = @transform_4, window_bounds = array<i64: 4, 1>}, {pipeline_mode = #tpu.pipeline_mode<synchronous>, transform_indices = @transform_5, window_bounds = array<i64: 4, 4>}, {pipeline_mode = #tpu.pipeline_mode<synchronous>, transform_indices = @transform_6, window_bounds = array<i64: 4, 1>}, {transform_indices = @transform_7, window_bounds = array<i64: 1, 4, 512>}]} {
    %0 = tpu.iota {dimensions = array<i32: 1>} : vector<1x256xi32>
    %c16_i32 = arith.constant 16 : i32
    %c0_i32 = arith.constant 0 : i32
    %1 = arith.cmpi eq, %c16_i32, %c0_i32 : i32
    %c1_i32 = arith.constant 1 : i32
    %2 = arith.select %1, %c1_i32, %c16_i32 : i32
    %3 = vector.broadcast %2 : i32 to vector<1x256xi32>
    %4 = arith.remsi %0, %3 : vector<1x256xi32>
    %c0_i32_0 = arith.constant 0 : i32
    %5 = vector.broadcast %c0_i32_0 : i32 to vector<1x256xi32>
    %6 = arith.cmpi ne, %4, %5 : vector<1x256xi32>
    %c0_i32_1 = arith.constant 0 : i32
    %7 = vector.broadcast %c0_i32_1 : i32 to vector<1x256xi32>
    %8 = arith.cmpi slt, %4, %7 : vector<1x256xi32>
    %c0_i32_2 = arith.constant 0 : i32
    %9 = arith.cmpi slt, %2, %c0_i32_2 : i32
    %10 = vector.broadcast %9 : i1 to vector<1x256xi1>
    %11 = vector.broadcast %10 : vector<1x256xi1> to vector<1x256xi1>
    %12 = arith.xori %8, %11 : vector<1x256xi1>
    %13 = arith.andi %12, %6 : vector<1x256xi1>
    %14 = vector.broadcast %2 : i32 to vector<1x256xi32>
    %15 = arith.addi %4, %14 : vector<1x256xi32>
    %16 = arith.select %13, %15, %4 : vector<1x256xi1>, vector<1x256xi32>
    %c0_i32_3 = arith.constant 0 : i32
    %17 = vector.broadcast %c0_i32_3 : i32 to vector<1x256xi32>
    %18 = arith.cmpi sgt, %16, %17 : vector<1x256xi32>
    %19 = arith.extui %18 : vector<1x256xi1> to vector<1x256xi32>
    %20 = arith.sitofp %19 : vector<1x256xi32> to vector<1x256xf32>
    %c15_i32 = arith.constant 15 : i32
    %21 = vector.broadcast %c15_i32 : i32 to vector<1x256xi32>
    %22 = arith.cmpi slt, %16, %21 : vector<1x256xi32>
    %23 = arith.extui %22 : vector<1x256xi1> to vector<1x256xi32>
    %24 = arith.sitofp %23 : vector<1x256xi32> to vector<1x256xf32>
    %c0 = arith.constant 0 : index
    %c0_4 = arith.constant 0 : index
    %c0_5 = arith.constant 0 : index
    %25 = vector.load %arg1[%c0, %c0_4, %c0_5] : memref<1x8x256xf32, #tpu.memory_space<vmem>>, vector<1x8x256xf32>
    %26 = vector.shape_cast %25 : vector<1x8x256xf32> to vector<8x256xf32>
    %27 = vector.extract_strided_slice %26 {offsets = [0, 0], sizes = [4, 256], strides = [1, 1]} : vector<8x256xf32> to vector<4x256xf32>
    %28 = vector.extract_strided_slice %26 {offsets = [4, 0], sizes = [4, 256], strides = [1, 1]} : vector<8x256xf32> to vector<4x256xf32>
    %c0_6 = arith.constant 0 : index
    %c0_7 = arith.constant 0 : index
    %29 = vector.load %arg2[%c0_6, %c0_7] : memref<4x4xf32, #tpu.memory_space<vmem>>, vector<4x4xf32>
    %cst = arith.constant dense<0.000000e+00> : vector<4x256xf32>
    %30 = tpu.matmul %29, %28, %cst {dimension_numbers = #tpu.dot_dimension_numbers<[1], [0], [0], [1], [0, 0, 1, 1], [], []>} : vector<4x4xf32>, vector<4x256xf32>, vector<4x256xf32> -> vector<4x256xf32>
    %c0_8 = arith.constant 0 : index
    %c0_9 = arith.constant 0 : index
    %31 = vector.load %arg3[%c0_8, %c0_9] : memref<4x1xf32, #tpu.memory_space<vmem>>, vector<4x1xf32>
    %32 = vector.broadcast %31 : vector<4x1xf32> to vector<4x256xf32>
    %33 = arith.addf %30, %32 : vector<4x256xf32>
    %cst_10 = arith.constant 0.000000e+00 : f32
    %34 = vector.broadcast %cst_10 : f32 to vector<4x256xf32>
    %35 = arith.maximumf %33, %34 : vector<4x256xf32>
    %c0_11 = arith.constant 0 : index
    %c0_12 = arith.constant 0 : index
    %36 = vector.load %arg4[%c0_11, %c0_12] : memref<4x9xf32, #tpu.memory_space<vmem>>, vector<4x9xf32>
    %cst_13 = arith.constant 0.000000e+00 : f32
    %37 = vector.broadcast %cst_13 : f32 to vector<4x17xf32>
    %c0_14 = arith.constant 0 : index
    %c0_15 = arith.constant 0 : index
    %38 = vector.load %arg9[%c0_14, %c0_15] : memref<4x290xf32, #tpu.memory_space<vmem>>, vector<4x17xf32>
    tpu.vector_store %arg9[%c0_14, %c0_15], %37 {strides = array<i32>} : memref<4x290xf32, #tpu.memory_space<vmem>>, vector<4x17xf32>,
    %c0_16 = arith.constant 0 : index
    %c273 = arith.constant 273 : index
    %39 = vector.load %arg9[%c0_16, %c273] : memref<4x290xf32, #tpu.memory_space<vmem>>, vector<4x17xf32>
    tpu.vector_store %arg9[%c0_16, %c273], %37 {strides = array<i32>} : memref<4x290xf32, #tpu.memory_space<vmem>>, vector<4x17xf32>,
    %c0_17 = arith.constant 0 : index
    %c17 = arith.constant 17 : index
    %40 = vector.load %arg9[%c0_17, %c17] : memref<4x290xf32, #tpu.memory_space<vmem>>, vector<4x256xf32>
    tpu.vector_store %arg9[%c0_17, %c17], %35 {strides = array<i32>} : memref<4x290xf32, #tpu.memory_space<vmem>>, vector<4x256xf32>,
    %cst_18 = arith.constant 0.000000e+00 : f32
    %41 = vector.broadcast %cst_18 : f32 to vector<4x256xf32>
    %cst_19 = arith.constant 0.000000e+00 : f32
    %42 = vector.broadcast %cst_19 : f32 to vector<4x256xf32>
    %cst_20 = arith.constant 0.000000e+00 : f32
    %43 = vector.broadcast %cst_20 : f32 to vector<4x256xf32>
    %44 = vector.extract_strided_slice %36 {offsets = [0, 0], sizes = [4, 1], strides = [1, 1]} : vector<4x9xf32> to vector<4x1xf32>
    %c0_21 = arith.constant 0 : index
    %c0_22 = arith.constant 0 : index
    %45 = vector.load %arg9[%c0_21, %c0_22] : memref<4x290xf32, #tpu.memory_space<vmem>>, vector<4x256xf32>
    %46 = vector.broadcast %44 : vector<4x1xf32> to vector<4x256xf32>
    %47 = arith.mulf %46, %45 : vector<4x256xf32>
    %48 = arith.addf %41, %47 : vector<4x256xf32>
    %49 = vector.extract_strided_slice %36 {offsets = [0, 1], sizes = [4, 1], strides = [1, 1]} : vector<4x9xf32> to vector<4x1xf32>
    %c0_23 = arith.constant 0 : index
    %c1 = arith.constant 1 : index
    %50 = vector.load %arg9[%c0_23, %c1] : memref<4x290xf32, #tpu.memory_space<vmem>>, vector<4x256xf32>
    %51 = vector.broadcast %49 : vector<4x1xf32> to vector<4x256xf32>
    %52 = arith.mulf %51, %50 : vector<4x256xf32>
    %53 = arith.addf %42, %52 : vector<4x256xf32>
    %54 = vector.extract_strided_slice %36 {offsets = [0, 2], sizes = [4, 1], strides = [1, 1]} : vector<4x9xf32> to vector<4x1xf32>
    %c0_24 = arith.constant 0 : index
    %c2 = arith.constant 2 : index
    %55 = vector.load %arg9[%c0_24, %c2] : memref<4x290xf32, #tpu.memory_space<vmem>>, vector<4x256xf32>
    %56 = vector.broadcast %54 : vector<4x1xf32> to vector<4x256xf32>
    %57 = arith.mulf %56, %55 : vector<4x256xf32>
    %58 = arith.addf %43, %57 : vector<4x256xf32>
    %59 = vector.extract_strided_slice %36 {offsets = [0, 3], sizes = [4, 1], strides = [1, 1]} : vector<4x9xf32> to vector<4x1xf32>
    %c0_25 = arith.constant 0 : index
    %c16 = arith.constant 16 : index
    %60 = vector.load %arg9[%c0_25, %c16] : memref<4x290xf32, #tpu.memory_space<vmem>>, vector<4x256xf32>
    %61 = vector.broadcast %59 : vector<4x1xf32> to vector<4x256xf32>
    %62 = arith.mulf %61, %60 : vector<4x256xf32>
    %63 = arith.addf %48, %62 : vector<4x256xf32>
    %64 = vector.extract_strided_slice %36 {offsets = [0, 4], sizes = [4, 1], strides = [1, 1]} : vector<4x9xf32> to vector<4x1xf32>
    %c0_26 = arith.constant 0 : index
    %c17_27 = arith.constant 17 : index
    %65 = vector.load %arg9[%c0_26, %c17_27] : memref<4x290xf32, #tpu.memory_space<vmem>>, vector<4x256xf32>
    %66 = vector.broadcast %64 : vector<4x1xf32> to vector<4x256xf32>
    %67 = arith.mulf %66, %65 : vector<4x256xf32>
    %68 = arith.addf %53, %67 : vector<4x256xf32>
    %69 = vector.extract_strided_slice %36 {offsets = [0, 5], sizes = [4, 1], strides = [1, 1]} : vector<4x9xf32> to vector<4x1xf32>
    %c0_28 = arith.constant 0 : index
    %c18 = arith.constant 18 : index
    %70 = vector.load %arg9[%c0_28, %c18] : memref<4x290xf32, #tpu.memory_space<vmem>>, vector<4x256xf32>
    %71 = vector.broadcast %69 : vector<4x1xf32> to vector<4x256xf32>
    %72 = arith.mulf %71, %70 : vector<4x256xf32>
    %73 = arith.addf %58, %72 : vector<4x256xf32>
    %74 = vector.extract_strided_slice %36 {offsets = [0, 6], sizes = [4, 1], strides = [1, 1]} : vector<4x9xf32> to vector<4x1xf32>
    %c0_29 = arith.constant 0 : index
    %c32 = arith.constant 32 : index
    %75 = vector.load %arg9[%c0_29, %c32] : memref<4x290xf32, #tpu.memory_space<vmem>>, vector<4x256xf32>
    %76 = vector.broadcast %74 : vector<4x1xf32> to vector<4x256xf32>
    %77 = arith.mulf %76, %75 : vector<4x256xf32>
    %78 = arith.addf %63, %77 : vector<4x256xf32>
    %79 = vector.extract_strided_slice %36 {offsets = [0, 7], sizes = [4, 1], strides = [1, 1]} : vector<4x9xf32> to vector<4x1xf32>
    %c0_30 = arith.constant 0 : index
    %c33 = arith.constant 33 : index
    %80 = vector.load %arg9[%c0_30, %c33] : memref<4x290xf32, #tpu.memory_space<vmem>>, vector<4x256xf32>
    %81 = vector.broadcast %79 : vector<4x1xf32> to vector<4x256xf32>
    %82 = arith.mulf %81, %80 : vector<4x256xf32>
    %83 = arith.addf %68, %82 : vector<4x256xf32>
    %84 = vector.extract_strided_slice %36 {offsets = [0, 8], sizes = [4, 1], strides = [1, 1]} : vector<4x9xf32> to vector<4x1xf32>
    %c0_31 = arith.constant 0 : index
    %c34 = arith.constant 34 : index
    %85 = vector.load %arg9[%c0_31, %c34] : memref<4x290xf32, #tpu.memory_space<vmem>>, vector<4x256xf32>
    %86 = vector.broadcast %84 : vector<4x1xf32> to vector<4x256xf32>
    %87 = arith.mulf %86, %85 : vector<4x256xf32>
    %88 = arith.addf %73, %87 : vector<4x256xf32>
    %89 = vector.broadcast %20 : vector<1x256xf32> to vector<4x256xf32>
    %90 = arith.mulf %78, %89 : vector<4x256xf32>
    %91 = arith.addf %90, %83 : vector<4x256xf32>
    %92 = vector.broadcast %24 : vector<1x256xf32> to vector<4x256xf32>
    %93 = arith.mulf %88, %92 : vector<4x256xf32>
    %94 = arith.addf %91, %93 : vector<4x256xf32>
    %c0_32 = arith.constant 0 : index
    %c0_33 = arith.constant 0 : index
    %95 = vector.load %arg5[%c0_32, %c0_33] : memref<4x1xf32, #tpu.memory_space<vmem>>, vector<4x1xf32>
    %96 = vector.broadcast %95 : vector<4x1xf32> to vector<4x256xf32>
    %97 = arith.addf %94, %96 : vector<4x256xf32>
    %c0_34 = arith.constant 0 : index
    %c0_35 = arith.constant 0 : index
    %98 = vector.load %arg6[%c0_34, %c0_35] : memref<4x4xf32, #tpu.memory_space<vmem>>, vector<4x4xf32>
    %cst_36 = arith.constant dense<0.000000e+00> : vector<4x256xf32>
    %99 = tpu.matmul %98, %97, %cst_36 {dimension_numbers = #tpu.dot_dimension_numbers<[1], [0], [0], [1], [0, 0, 1, 1], [], []>} : vector<4x4xf32>, vector<4x256xf32>, vector<4x256xf32> -> vector<4x256xf32>
    %c0_37 = arith.constant 0 : index
    %c0_38 = arith.constant 0 : index
    %100 = vector.load %arg7[%c0_37, %c0_38] : memref<4x1xf32, #tpu.memory_space<vmem>>, vector<4x1xf32>
    %101 = vector.broadcast %100 : vector<4x1xf32> to vector<4x256xf32>
    %102 = arith.addf %99, %101 : vector<4x256xf32>
    %cst_39 = arith.constant 0.000000e+00 : f32
    %103 = vector.broadcast %cst_39 : f32 to vector<4x256xf32>
    %104 = arith.maximumf %102, %103 : vector<4x256xf32>
    %105 = tpu.concatenate %27, %104 in 1 : vector<4x256xf32>, vector<4x256xf32> -> vector<4x512xf32>
    %c0_40 = arith.constant 0 : index
    %c0_41 = arith.constant 0 : index
    %c0_42 = arith.constant 0 : index
    %106 = vector.load %arg8[%c0_40, %c0_41, %c0_42] : memref<1x4x512xf32, #tpu.memory_space<vmem>>, vector<1x4x512xf32>
    %107 = vector.shape_cast %106 : vector<1x4x512xf32> to vector<4x512xf32>
    %108 = vector.shape_cast %105 : vector<4x512xf32> to vector<1x4x512xf32>
    tpu.vector_store %arg8[%c0_40, %c0_41, %c0_42], %108 {strides = array<i32>} : memref<1x4x512xf32, #tpu.memory_space<vmem>>, vector<1x4x512xf32>,
    return
  }
  func.func @transform_0(%arg0: i32) -> (i32, i32, i32) {
    %c0_i32 = arith.constant 0 : i32
    %c0_i32_0 = arith.constant 0 : i32
    %c0_i32_1 = arith.constant 0 : i32
    return %arg0, %c0_i32, %c0_i32_0 : i32, i32, i32
  }
  func.func @transform_1(%arg0: i32) -> (i32, i32) {
    %c0_i32 = arith.constant 0 : i32
    %c0_i32_0 = arith.constant 0 : i32
    %c0_i32_1 = arith.constant 0 : i32
    return %c0_i32, %c0_i32_0 : i32, i32
  }
  func.func @transform_2(%arg0: i32) -> (i32, i32) {
    %c0_i32 = arith.constant 0 : i32
    %c0_i32_0 = arith.constant 0 : i32
    %c0_i32_1 = arith.constant 0 : i32
    return %c0_i32, %c0_i32_0 : i32, i32
  }
  func.func @transform_3(%arg0: i32) -> (i32, i32) {
    %c0_i32 = arith.constant 0 : i32
    %c0_i32_0 = arith.constant 0 : i32
    %c0_i32_1 = arith.constant 0 : i32
    return %c0_i32, %c0_i32_0 : i32, i32
  }
  func.func @transform_4(%arg0: i32) -> (i32, i32) {
    %c0_i32 = arith.constant 0 : i32
    %c0_i32_0 = arith.constant 0 : i32
    %c0_i32_1 = arith.constant 0 : i32
    return %c0_i32, %c0_i32_0 : i32, i32
  }
  func.func @transform_5(%arg0: i32) -> (i32, i32) {
    %c0_i32 = arith.constant 0 : i32
    %c0_i32_0 = arith.constant 0 : i32
    %c0_i32_1 = arith.constant 0 : i32
    return %c0_i32, %c0_i32_0 : i32, i32
  }
  func.func @transform_6(%arg0: i32) -> (i32, i32) {
    %c0_i32 = arith.constant 0 : i32
    %c0_i32_0 = arith.constant 0 : i32
    %c0_i32_1 = arith.constant 0 : i32
    return %c0_i32, %c0_i32_0 : i32, i32
  }
  func.func @transform_7(%arg0: i32) -> (i32, i32, i32) {
    %c0_i32 = arith.constant 0 : i32
    %c0_i32_0 = arith.constant 0 : i32
    %c0_i32_1 = arith.constant 0 : i32
    return %arg0, %c0_i32, %c0_i32_0 : i32, i32, i32
  }
}

</mosaic_0001>

<llo_original>
// kernel: tpu_custom_call.1
$region0: #{tpu_custom_call.1}
  #allocation0 [shape = 'u32[]', space=smem, size = 0x4, offset = 0x4, fixed_abs, tag = 'smem constant byte address 0x4 - core index']
  #allocation1 [shape = 'u32[72,128]{1,0:T(1,128)}', space=vmem, size = 0x9000, scoped, tag = 'internal scratch']
  #allocation2 [shape = 'f32[4,290]{1,0:T(4,128)}', space=vmem, size = 0x1800, scoped, tag = 'scratch operand']
  %s0 = inlined_call_operand.hbm [shape: f32[2,8,256], index: 0, kind: input, shape index: {}]
  %s1 = inlined_call_operand.vmem [shape: f32[4,4], index: 1, kind: input, shape index: {}]
  %s2 = inlined_call_operand.vmem [shape: f32[4,1], index: 2, kind: input, shape index: {}]
  %s3 = inlined_call_operand.vmem [shape: f32[4,9], index: 3, kind: input, shape index: {}]
  %s4 = inlined_call_operand.vmem [shape: f32[4,1], index: 4, kind: input, shape index: {}]
  %s5 = inlined_call_operand.vmem [shape: f32[4,4], index: 5, kind: input, shape index: {}]
  %s6 = inlined_call_operand.vmem [shape: f32[4,1], index: 6, kind: input, shape index: {}]
  %s7 = inlined_call_operand.hbm [shape: f32[2,4,512], index: 7, kind: output, shape index: {}]
  %s8 = sld [smem:[#allocation0]]
  $region65: #{tpu_custom_call.1} parent=0
    _
  %s10 = ssub.s32 1, %s8
  %s11 = scalar_select 0, %s10, %s8
  $region1: #{tpu_custom_call.1} parent=0
    #allocation3 [shape = 'u8[16384]{0}', space=vmem, size = 0x4000, scoped, tag = 'input window, operand 0']
    #allocation4 [shape = 's32[2]{0}', space=sflag, size = 0x8, scoped, tag = 'scoped memory for tpu_custom_call.1']
    #allocation5 [shape = 's32[2]{0}', space=sflag, size = 0x8, scoped, tag = 'scoped memory for tpu_custom_call.1']
    #allocation6 [shape = 'u8[16384]{0}', space=vmem, size = 0x4000, scoped, tag = 'output window, operand 0']
    %12 = vsyncpa [#allocation4], 0
    %s13 = scalar_lea.sflag [#allocation4], 1
    %14 = vsyncpa %s13, 0
    %15 = vsyncpa [#allocation5], 0
    %s16 = scalar_lea.sflag [#allocation5], 1
    %17 = vsyncpa %s16, 0
    loop: start=0, step=1, limit=4
    $region2: #{tpu_custom_call.1} parent=1 // loop_pre_header
      _
    $region3: #{tpu_custom_call.1} parent=1 // loop_header
      %s19 = sphi 0, %s23
      %p20 = scmp.ge.s32.totalorder %s19, 4
      %s29 = sphi 0, %s31
      %s32 = sphi 0, %s29
      %s33 = sphi 0, %s32
      %s49 = sphi 0, %s33
      %s53 = sphi 0, %s53
      %s55 = sphi 0, %s53
      %s56 = sphi 0, %s55
      %s70 = sphi 0, %s56
      %s74 = sphi 0, %s74
      %s76 = sphi 0, %s74
      %s77 = sphi 0, %s76
      %s91 = sphi 0, %s77
      %s95 = sphi 0, %s95
      %s97 = sphi 0, %s95
      %s98 = sphi 0, %s97
      %s112 = sphi 0, %s98
      %s116 = sphi 0, %s116
      %s118 = sphi 0, %s116
      %s119 = sphi 0, %s118
      %s133 = sphi 0, %s119
      %s137 = sphi 0, %s137
      %s139 = sphi 0, %s137
      %s140 = sphi 0, %s139
      %s154 = sphi 0, %s140
      %s158 = sphi 0, %s158
      %s160 = sphi 0, %s158
      %s161 = sphi 0, %s160
      %s175 = sphi 0, %s161
      %s181 = sphi 0, %s183
      %s184 = sphi 0, %s181
      %s185 = sphi 0, %s184
      %s201 = sphi 0, %s185
    $region4: #{tpu_custom_call.1} parent=1 // loop_header_branch
      %22 = sbr.rel (%p20) target = $region8
    $region5: #{tpu_custom_call.1} parent=1 // loop_body
      %s24 = ssub.s32 %s19, 1
      %s25 = ssub.s32 %s19, 2
      %s26 = sadd.s32 %s19, 1
      %s27 = ssub.s32 %s19, %s26
      %p28 = scmp.eq.s32.totalorder %s27, 0
      %s30 = sadd.s32 %s29, 1
      %s31 = scalar_select %p28, %s29, %s30
      %p34 = pneg %p28
      %p35 = scmp.eq.s32.totalorder %s19, 1
      %p36 = por %p34, %p35
      %p37 = scmp.ne.s32.totalorder %s29, %s32
      %p38 = scmp.eq.s32.totalorder %s19, 0
      %p39 = por %p37, %p38
      %p40 = scmp.ne.s32.totalorder %s29, %s32
      %p41 = scmp.eq.s32.totalorder %s24, 1
      %p42 = por %p40, %p41
      %p43 = scmp.ne.s32.totalorder %s32, %s33
      %p44 = scmp.eq.s32.totalorder %s24, 0
      %p45 = por %p43, %p44
      %p46 = scmp.ne.s32.totalorder %s32, %s33
      %p47 = scmp.eq.s32.totalorder %s25, 1
      %p48 = por %p46, %p47
      %p50 = scmp.ne.s32.totalorder %s33, %s49
      %p51 = scmp.eq.s32.totalorder %s25, 0
      %p52 = por %p50, %p51
      %s54 = sadd.s32 %s53, 1
      %p57 = scmp.eq.s32.totalorder %s19, 1
      %p58 = scmp.ne.s32.totalorder %s53, %s55
      %p59 = scmp.eq.s32.totalorder %s19, 0
      %p60 = por %p58, %p59
      %p61 = scmp.ne.s32.totalorder %s53, %s55
      %p62 = scmp.eq.s32.totalorder %s24, 1
      %p63 = por %p61, %p62
      %p64 = scmp.ne.s32.totalorder %s55, %s56
      %p65 = scmp.eq.s32.totalorder %s24, 0
      %p66 = por %p64, %p65
      %p67 = scmp.ne.s32.totalorder %s55, %s56
      %p68 = scmp.eq.s32.totalorder %s25, 1
      %p69 = por %p67, %p68
      %p71 = scmp.ne.s32.totalorder %s56, %s70
      %p72 = scmp.eq.s32.totalorder %s25, 0
      %p73 = por %p71, %p72
      %s75 = sadd.s32 %s74, 1
      %p78 = scmp.eq.s32.totalorder %s19, 1
      %p79 = scmp.ne.s32.totalorder %s74, %s76
      %p80 = scmp.eq.s32.totalorder %s19, 0
      %p81 = por %p79, %p80
      %p82 = scmp.ne.s32.totalorder %s74, %s76
      %p83 = scmp.eq.s32.totalorder %s24, 1
      %p84 = por %p82, %p83
      %p85 = scmp.ne.s32.totalorder %s76, %s77
      %p86 = scmp.eq.s32.totalorder %s24, 0
      %p87 = por %p85, %p86
      %p88 = scmp.ne.s32.totalorder %s76, %s77
      %p89 = scmp.eq.s32.totalorder %s25, 1
      %p90 = por %p88, %p89
      %p92 = scmp.ne.s32.totalorder %s77, %s91
      %p93 = scmp.eq.s32.totalorder %s25, 0
      %p94 = por %p92, %p93
      %s96 = sadd.s32 %s95, 1
      %p99 = scmp.eq.s32.totalorder %s19, 1
      %p100 = scmp.ne.s32.totalorder %s95, %s97
      %p101 = scmp.eq.s32.totalorder %s19, 0
      %p102 = por %p100, %p101
      %p103 = scmp.ne.s32.totalorder %s95, %s97
      %p104 = scmp.eq.s32.totalorder %s24, 1
      %p105 = por %p103, %p104
      %p106 = scmp.ne.s32.totalorder %s97, %s98
      %p107 = scmp.eq.s32.totalorder %s24, 0
      %p108 = por %p106, %p107
      %p109 = scmp.ne.s32.totalorder %s97, %s98
      %p110 = scmp.eq.s32.totalorder %s25, 1
      %p111 = por %p109, %p110
      %p113 = scmp.ne.s32.totalorder %s98, %s112
      %p114 = scmp.eq.s32.totalorder %s25, 0
      %p115 = por %p113, %p114
      %s117 = sadd.s32 %s116, 1
      %p120 = scmp.eq.s32.totalorder %s19, 1
      %p121 = scmp.ne.s32.totalorder %s116, %s118
      %p122 = scmp.eq.s32.totalorder %s19, 0
      %p123 = por %p121, %p122
      %p124 = scmp.ne.s32.totalorder %s116, %s118
      %p125 = scmp.eq.s32.totalorder %s24, 1
      %p126 = por %p124, %p125
      %p127 = scmp.ne.s32.totalorder %s118, %s119
      %p128 = scmp.eq.s32.totalorder %s24, 0
      %p129 = por %p127, %p128
      %p130 = scmp.ne.s32.totalorder %s118, %s119
      %p131 = scmp.eq.s32.totalorder %s25, 1
      %p132 = por %p130, %p131
      %p134 = scmp.ne.s32.totalorder %s119, %s133
      %p135 = scmp.eq.s32.totalorder %s25, 0
      %p136 = por %p134, %p135
      %s138 = sadd.s32 %s137, 1
      %p141 = scmp.eq.s32.totalorder %s19, 1
      %p142 = scmp.ne.s32.totalorder %s137, %s139
      %p143 = scmp.eq.s32.totalorder %s19, 0
      %p144 = por %p142, %p143
      %p145 = scmp.ne.s32.totalorder %s137, %s139
      %p146 = scmp.eq.s32.totalorder %s24, 1
      %p147 = por %p145, %p146
      %p148 = scmp.ne.s32.totalorder %s139, %s140
      %p149 = scmp.eq.s32.totalorder %s24, 0
      %p150 = por %p148, %p149
      %p151 = scmp.ne.s32.totalorder %s139, %s140
      %p152 = scmp.eq.s32.totalorder %s25, 1
      %p153 = por %p151, %p152
      %p155 = scmp.ne.s32.totalorder %s140, %s154
      %p156 = scmp.eq.s32.totalorder %s25, 0
      %p157 = por %p155, %p156
      %s159 = sadd.s32 %s158, 1
      %p162 = scmp.eq.s32.totalorder %s19, 1
      %p163 = scmp.ne.s32.totalorder %s158, %s160
      %p164 = scmp.eq.s32.totalorder %s19, 0
      %p165 = por %p163, %p164
      %p166 = scmp.ne.s32.totalorder %s158, %s160
      %p167 = scmp.eq.s32.totalorder %s24, 1
      %p168 = por %p166, %p167
      %p169 = scmp.ne.s32.totalorder %s160, %s161
      %p170 = scmp.eq.s32.totalorder %s24, 0
      %p171 = por %p169, %p170
      %p172 = scmp.ne.s32.totalorder %s160, %s161
      %p173 = scmp.eq.s32.totalorder %s25, 1
      %p174 = por %p172, %p173
      %p176 = scmp.ne.s32.totalorder %s161, %s175
      %p177 = scmp.eq.s32.totalorder %s25, 0
      %p178 = por %p176, %p177
      %s179 = ssub.s32 %s19, %s26
      %p180 = scmp.eq.s32.totalorder %s179, 0
      %s182 = sadd.s32 %s181, 1
      %s183 = scalar_select %p180, %s181, %s182
      %p186 = pneg %p180
      %p187 = scmp.eq.s32.totalorder %s19, 1
      %p188 = por %p186, %p187
      %p189 = scmp.ne.s32.totalorder %s181, %s184
      %p190 = scmp.eq.s32.totalorder %s19, 0
      %p191 = por %p189, %p190
      %p192 = scmp.ne.s32.totalorder %s181, %s184
      %p193 = scmp.eq.s32.totalorder %s24, 1
      %p194 = por %p192, %p193
      %p195 = scmp.ne.s32.totalorder %s184, %s185
      %p196 = scmp.eq.s32.totalorder %s24, 0
      %p197 = por %p195, %p196
      %p198 = scmp.ne.s32.totalorder %s184, %s185
      %p199 = scmp.eq.s32.totalorder %s25, 1
      %p200 = por %p198, %p199
      %p202 = scmp.ne.s32.totalorder %s185, %s201
      %p203 = scmp.eq.s32.totalorder %s25, 0
      %p204 = por %p202, %p203
      %p205 = scmp.le.s32.totalorder 1, %s19
      %p206 = scmp.lt.s32.totalorder %s19, 3
      %p207 = pnand %p205, %p206
      %p208 = pneg %p207
      // Predicated region
      $region9: #{tpu_custom_call.1} parent=5 // pred_check
        _
      $region10: #{tpu_custom_call.1} parent=5 // pred_check_branch
        %210 = sbr.rel (%p207) target = $region12
      $region11: #{tpu_custom_call.1} parent=5 // pred_region
        %s211 = ssub.s32 %s19, 1
        // Predicated region
        $region13: #{tpu_custom_call.1} parent=11 // pred_check
          %p212 = pneg %p66
        $region14: #{tpu_custom_call.1} parent=11 // pred_check_branch
          %214 = sbr.rel (%p212) target = $region16
        $region15: #{tpu_custom_call.1} parent=11 // pred_region
          _
        $region16: #{tpu_custom_call.1} parent=11 // pred_fallthru
          _
        // Predicated region
        $region17: #{tpu_custom_call.1} parent=11 // pred_check
          %p215 = pneg %p87
        $region18: #{tpu_custom_call.1} parent=11 // pred_check_branch
          %217 = sbr.rel (%p215) target = $region20
        $region19: #{tpu_custom_call.1} parent=11 // pred_region
          _
        $region20: #{tpu_custom_call.1} parent=11 // pred_fallthru
          _
        // Predicated region
        $region21: #{tpu_custom_call.1} parent=11 // pred_check
          %p218 = pneg %p108
        $region22: #{tpu_custom_call.1} parent=11 // pred_check_branch
          %220 = sbr.rel (%p218) target = $region24
        $region23: #{tpu_custom_call.1} parent=11 // pred_region
          _
        $region24: #{tpu_custom_call.1} parent=11 // pred_fallthru
          _
        // Predicated region
        $region25: #{tpu_custom_call.1} parent=11 // pred_check
          %p221 = pneg %p129
        $region26: #{tpu_custom_call.1} parent=11 // pred_check_branch
          %223 = sbr.rel (%p221) target = $region28
        $region27: #{tpu_custom_call.1} parent=11 // pred_region
          _
        $region28: #{tpu_custom_call.1} parent=11 // pred_fallthru
          _
        // Predicated region
        $region29: #{tpu_custom_call.1} parent=11 // pred_check
          %p224 = pneg %p150
        $region30: #{tpu_custom_call.1} parent=11 // pred_check_branch
          %226 = sbr.rel (%p224) target = $region32
        $region31: #{tpu_custom_call.1} parent=11 // pred_region
          _
        $region32: #{tpu_custom_call.1} parent=11 // pred_fallthru
          _
        // Predicated region
        $region33: #{tpu_custom_call.1} parent=11 // pred_check
          %p227 = pneg %p171
        $region34: #{tpu_custom_call.1} parent=11 // pred_check_branch
          %229 = sbr.rel (%p227) target = $region36
        $region35: #{tpu_custom_call.1} parent=11 // pred_region
          _
        $region36: #{tpu_custom_call.1} parent=11 // pred_fallthru
          _
      $region12: #{tpu_custom_call.1} parent=5 // pred_fallthru
        _
      %p230 = scmp.lt.s32.totalorder %s19, 2
      // Predicated region
      $region37: #{tpu_custom_call.1} parent=5 // pred_check
        %p231 = pneg %p230
      $region38: #{tpu_custom_call.1} parent=5 // pred_check_branch
        %233 = sbr.rel (%p231) target = $region40
      $region39: #{tpu_custom_call.1} parent=5 // pred_region
        // Predicated region
        $region41: #{tpu_custom_call.1} parent=39 // pred_check
          %p234 = pneg %p39
        $region42: #{tpu_custom_call.1} parent=39 // pred_check_branch
          %236 = sbr.rel (%p234) target = $region44
        $region43: #{tpu_custom_call.1} parent=39 // pred_region
          %s237 = sand.u32 %s29, 1
          %s238 = scalar_lea.sflag [#allocation4], %s237
          %s239 = sand.u32 %s29, 1
          %s240 = smul.addr %s239, 16
          %s241 = scalar_lea.vmem [#allocation3], %s240
          %243 = vsyncadd %s238, 0
          %s244 = smul.addr %s19, 2
          %s245 = smul.addr %s244, 8
          %s246 = scalar_lea.hbm %s0, %s245
          %s248 = sshll.u32 %s246, 4
          %s249 = int_to_ptr.hbm [resolvable:$true] %s248
          %s250 = sshll.u32 %s241, 4
          %s251 = int_to_ptr.vmem [resolvable:$true] %s250
          %253 = dma.hbm_to_vmem [thread:$0]  %s249, 256, %s251, %s238
        $region44: #{tpu_custom_call.1} parent=39 // pred_fallthru
          _
      $region40: #{tpu_custom_call.1} parent=5 // pred_fallthru
        _
      %p254 = scmp.le.s32.totalorder 1, %s19
      %p255 = scmp.lt.s32.totalorder %s19, 3
      %p256 = pnand %p254, %p255
      %p257 = pneg %p256
      // Predicated region
      $region45: #{tpu_custom_call.1} parent=5 // pred_check
        _
      $region46: #{tpu_custom_call.1} parent=5 // pred_check_branch
        %259 = sbr.rel (%p256) target = $region48
      $region47: #{tpu_custom_call.1} parent=5 // pred_region
        %s260 = ssub.s32 %s19, 1
        %s261 = sand.u32 %s32, 1
        %s262 = scalar_lea.sflag [#allocation4], %s261
        %s263 = sand.u32 %s32, 1
        %s264 = smul.addr %s263, 16
        %s265 = scalar_lea.vmem [#allocation3], %s264
        // Predicated region
        $region49: #{tpu_custom_call.1} parent=47 // pred_check
          %p266 = pneg %p45
        $region50: #{tpu_custom_call.1} parent=47 // pred_check_branch
          %268 = sbr.rel (%p266) target = $region52
        $region51: #{tpu_custom_call.1} parent=47 // pred_region
          %270 = dma.done %s262, 256
        $region52: #{tpu_custom_call.1} parent=47 // pred_fallthru
          _
        %s271 = sand.u32 %s32, 1
        %s272 = scalar_lea.sflag [#allocation4], %s271
        %s273 = sand.u32 %s32, 1
        %s274 = smul.addr %s273, 16
        %s275 = scalar_lea.vmem [#allocation3], %s274
        %p276 = pneg %p45
        %p277 = pneg %p42
        %p278 = pneg %p66
        %p279 = pneg %p63
        %p280 = pneg %p87
        %p281 = pneg %p84
        %p282 = pneg %p108
        %p283 = pneg %p105
        %p284 = pneg %p129
        %p285 = pneg %p126
        %p286 = pneg %p150
        %p287 = pneg %p147
        %p288 = pneg %p171
        %p289 = pneg %p168
        %p290 = pneg %p197
        %p291 = pneg %p194
        %s292 = sand.u32 %s184, 1
        %s293 = scalar_lea.sflag [#allocation5], %s292
        %s294 = sand.u32 %s184, 1
        %s295 = smul.addr %s294, 16
        %s296 = scalar_lea.vmem [#allocation6], %s295
        %v297 = vlaneseq
        %v298 = vand.u32 %v297, 127
        %v299 = vadd.s32 %v298, 128
        %vm300 = vcmp.lt.s32.totalorder %v298, 0
        %v301 = vsub.s32 0, %v298
        %v302 = vsel %vm300, %v301, %v298
        %v303 = vshrl.u32 %v302, 4
        %v304 = vand.u32 %v302, 15
        %v305 = vsub.s32 0, %v304
        %v306 = vsel %vm300, %v305, %v304
        %vm307 = vcmp.lt.s32.totalorder %v299, 0
        %v308 = vsub.s32 0, %v299
        %v309 = vsel %vm307, %v308, %v299
        %v310 = vshrl.u32 %v309, 4
        %v311 = vand.u32 %v309, 15
        %v312 = vsub.s32 0, %v311
        %v313 = vsel %vm307, %v312, %v311
        %vm314 = vcmp.ne.s32.totalorder %v306, 0
        %vm315 = vcmp.ne.s32.totalorder %v313, 0
        %vm316 = vcmp.lt.s32.totalorder %v306, 0
        %vm317 = vcmp.lt.s32.totalorder %v313, 0
        %vm318 = vmand %vm316, %vm314
        %vm319 = vmand %vm317, %vm315
        %v320 = vadd.s32 %v306, 16
        %v321 = vadd.s32 %v313, 16
        %v322 = vsel %vm318, %v320, %v306
        %v323 = vsel %vm319, %v321, %v313
        %vm324 = vcmp.gt.s32.totalorder %v322, 0
        %vm325 = vcmp.gt.s32.totalorder %v323, 0
        %v326 = vsel %vm324, 1, 0
        %v327 = vsel %vm325, 1, 0
        %v328 = vcvt.s32.f32 %v326
        %v329 = vcvt.s32.f32 %v327
        %vm330 = vcmp.lt.s32.totalorder %v322, 15
        %vm331 = vcmp.lt.s32.totalorder %v323, 15
        %v332 = vsel %vm330, 1, 0
        %v333 = vsel %vm331, 1, 0
        %v334 = vcvt.s32.f32 %v332
        %v335 = vcvt.s32.f32 %v333
        %v336 = vld [vmem:[%s265] sm:$0xff]
        %v337 = vld [vmem:[%s265 + $0x8] sm:$0xff]
        %v338 = vld [vmem:[%s1] sm:$0xf]
        %v339 = vld [vmem:[%s2] sm:$0xf]
        %341 = vset.pattern.permute.xlu0 0
        %342 = vperm.xlu0 %341, %v339
        %v343 = vpop.permute.xlu0 %342
        %v347 = vrot.slane %v336, 4
        %v348 = vrot.slane %v337, 4
        %vm349 = vcmask 31744
        %v351 = vsel %vm349, %v338, 0
        %vm353 = vcmask 1043456
        %v354 = vsel %vm353, %v347, 0
        %v356 = vsel %vm353, %v348, 0
        %358 = vmatpush.msra.mxu0 0.0
        %359 = vmatpush.msra.mxu0 0.0
        %360 = vmatpush.msra.mxu0 0.0
        %361 = vmatpush.msra.mxu0 0.0
        %362 = vmatpush.msra.mxu0 0.0
        %363 = vmatpush.msra.mxu0 0.0
        %364 = vmatpush.msra.mxu0 0.0
        %365 = vmatpush.msra.mxu0 0.0
        %366 = vmatpush.msra.mxu0 0.0
        %367 = vmatpush.msra.mxu0 0.0
        %368 = vmatpush.msra.mxu0 0.0
        %369 = vmatpush.msra.mxu0 0.0
        %370 = vmatpush.msra.mxu0 0.0
        %371 = vmatpush.msra.mxu0 0.0
        %372 = vmatpush.msra.mxu0 0.0
        %373 = vmatpush.msra.mxu0 %v354
        %374 = vmatmul.f32.gmra.mxu0 %v351
        %v375 = vpop.f32.mrf.mxu0
        %v376 = vadd.f32 %v343, %v375
        %377 = vdwg.mxu0
        %378 = vmatpush.msra.mxu0 0.0
        %379 = vmatpush.msra.mxu0 0.0
        %380 = vmatpush.msra.mxu0 0.0
        %381 = vmatpush.msra.mxu0 0.0
        %382 = vmatpush.msra.mxu0 0.0
        %383 = vmatpush.msra.mxu0 0.0
        %384 = vmatpush.msra.mxu0 0.0
        %385 = vmatpush.msra.mxu0 0.0
        %386 = vmatpush.msra.mxu0 0.0
        %387 = vmatpush.msra.mxu0 0.0
        %388 = vmatpush.msra.mxu0 0.0
        %389 = vmatpush.msra.mxu0 0.0
        %390 = vmatpush.msra.mxu0 0.0
        %391 = vmatpush.msra.mxu0 0.0
        %392 = vmatpush.msra.mxu0 0.0
        %393 = vmatpush.msra.mxu0 %v356
        %394 = vmatmul.f32.gmra.mxu0 %v351
        %v395 = vpop.f32.mrf.mxu0
        %v396 = vadd.f32 %v343, %v395
        %397 = vdwg.mxu0
        %v398 = vmax.f32 %v376, 0.0
        %v399 = vmax.f32 %v396, 0.0
        %v400 = vld [vmem:[%s3] sm:$0xf]
        %vm401 = vcmask 134144
        %402 = vst.msk [vmem:[#allocation2] sm:$0xf] %vm401, 0.0
        %vm403 = vcmask 273544
        %404 = vst.msk [vmem:[#allocation2 + $0x8] sm:$0xf] %vm403, 0.0
        %v407 = vrot.slane %v399, 4
        %v408 = vsel %vm353, %v398, %v407
        %409 = vrot.lane.b32.xlu0 %v408, 17
        %v410 = vpop.permute.xlu0 %409
        %v411 = vrot.slane %v410, 4
        %vm412 = vcmask 138240
        %v413 = vsel %vm412, %v411, %v410
        %vm416 = vcmask 1043592
        %vm417 = vcmask 1047556
        %vm418 = vmor %vm417, %vm416
        %419 = vst.msk [vmem:[#allocation2] sm:$0xff] %vm418, %v413
        %420 = vst.msk [vmem:[#allocation2 + $0x8] sm:$0xf] %vm401, %v411
        %v421 = vld [vmem:[#allocation2] sm:$0xff]
        %423 = vset.pattern.permute.xlu0 0
        %424 = vperm.xlu0 %423, %v400
        %v425 = vpop.permute.xlu0 %424
        %428 = vst [vmem:[#allocation1] ss:$2 sm:$0xff] %v421
        %v429 = vld.sshfl [vmem:[#allocation1] sm:$0xff pattern:$0x75316420]
        %v430 = vld.sshfl [vmem:[#allocation1 + $0x8] sm:$0xff pattern:$0x75316420]
        %v433 = vmul.f32 %v425, %v429
        %v434 = vmul.f32 %v425, %v430
        %v435 = vadd.f32 %v433, 0.0
        %v436 = vadd.f32 %v434, 0.0
        %v437 = vld [vmem:[#allocation2] sm:$0xff]
        %v438 = vld [vmem:[#allocation2 + $0x8] sm:$0xf]
        %439 = vset.pattern.permute.xlu0 1
        %440 = vperm.xlu0 %439, %v400
        %v441 = vpop.permute.xlu0 %440
        %445 = vst [vmem:[#allocation1] ss:$2 sm:$0xff] %v437
        %s446 = scalar_lea.vmem [#allocation1], 16
        %447 = vst [vmem:[%s446] ss:$2 sm:$0xff] %v438
        %v448 = vld.sshfl [vmem:[#allocation1] sm:$0xff pattern:$0x75316420]
        %v449 = vld.sshfl [vmem:[#allocation1 + $0x8] sm:$0xff pattern:$0x75316420]
        %v450 = vld.sshfl [vmem:[#allocation1 + $0x10] sm:$0xff pattern:$0x75316420]
        %451 = vrot.lane.b32.xlu0 %v448, 127
        %v452 = vpop.permute.xlu0 %451
        %453 = vrot.lane.b32.xlu0 %v449, 127
        %v454 = vpop.permute.xlu0 %453
        %455 = vrot.lane.b32.xlu0 %v450, 127
        %v456 = vpop.permute.xlu0 %455
        %vm457 = vcmask 1039360
        %v458 = vsel %vm457, %v452, %v454
        %v459 = vsel %vm457, %v454, %v456
        %v462 = vmul.f32 %v441, %v458
        %v463 = vmul.f32 %v441, %v459
        %v464 = vadd.f32 %v462, 0.0
        %v465 = vadd.f32 %v463, 0.0
        %v466 = vld [vmem:[#allocation2] sm:$0xff]
        %v467 = vld [vmem:[#allocation2 + $0x8] sm:$0xf]
        %468 = vset.pattern.permute.xlu0 2
        %469 = vperm.xlu0 %468, %v400
        %v470 = vpop.permute.xlu0 %469
        %474 = vst [vmem:[#allocation1] ss:$2 sm:$0xff] %v466
        %s475 = scalar_lea.vmem [#allocation1], 16
        %476 = vst [vmem:[%s475] ss:$2 sm:$0xff] %v467
        %v477 = vld.sshfl [vmem:[#allocation1] sm:$0xff pattern:$0x75316420]
        %v478 = vld.sshfl [vmem:[#allocation1 + $0x8] sm:$0xff pattern:$0x75316420]
        %v479 = vld.sshfl [vmem:[#allocation1 + $0x10] sm:$0xff pattern:$0x75316420]
        %480 = vrot.lane.b32.xlu0 %v477, 126
        %v481 = vpop.permute.xlu0 %480
        %482 = vrot.lane.b32.xlu0 %v478, 126
        %v483 = vpop.permute.xlu0 %482
        %484 = vrot.lane.b32.xlu0 %v479, 126
        %v485 = vpop.permute.xlu0 %484
        %vm486 = vcmask 1031168
        %v487 = vsel %vm486, %v481, %v483
        %v488 = vsel %vm486, %v483, %v485
        %v491 = vmul.f32 %v470, %v487
        %v492 = vmul.f32 %v470, %v488
        %v493 = vadd.f32 %v491, 0.0
        %v494 = vadd.f32 %v492, 0.0
        %v495 = vld [vmem:[#allocation2] sm:$0xff]
        %v496 = vld [vmem:[#allocation2 + $0x8] sm:$0xf]
        %497 = vset.pattern.permute.xlu0 3
        %498 = vperm.xlu0 %497, %v400
        %v499 = vpop.permute.xlu0 %498
        %503 = vst [vmem:[#allocation1] ss:$2 sm:$0xff] %v495
        %s504 = scalar_lea.vmem [#allocation1], 16
        %505 = vst [vmem:[%s504] ss:$2 sm:$0xff] %v496
        %v506 = vld.sshfl [vmem:[#allocation1] sm:$0xff pattern:$0x75316420]
        %v507 = vld.sshfl [vmem:[#allocation1 + $0x8] sm:$0xff pattern:$0x75316420]
        %v508 = vld.sshfl [vmem:[#allocation1 + $0x10] sm:$0xff pattern:$0x75316420]
        %509 = vrot.lane.b32.xlu0 %v506, 112
        %v510 = vpop.permute.xlu0 %509
        %511 = vrot.lane.b32.xlu0 %v507, 112
        %v512 = vpop.permute.xlu0 %511
        %513 = vrot.lane.b32.xlu0 %v508, 112
        %v514 = vpop.permute.xlu0 %513
        %vm515 = vcmask 916480
        %v516 = vsel %vm515, %v510, %v512
        %v517 = vsel %vm515, %v512, %v514
        %v520 = vmul.f32 %v499, %v516
        %v521 = vmul.f32 %v499, %v517
        %v522 = vadd.f32 %v435, %v520
        %v523 = vadd.f32 %v436, %v521
        %v524 = vld [vmem:[#allocation2] sm:$0xff]
        %v525 = vld [vmem:[#allocation2 + $0x8] sm:$0xf]
        %526 = vset.pattern.permute.xlu0 4
        %527 = vperm.xlu0 %526, %v400
        %v528 = vpop.permute.xlu0 %527
        %532 = vst [vmem:[#allocation1] ss:$2 sm:$0xff] %v524
        %s533 = scalar_lea.vmem [#allocation1], 16
        %534 = vst [vmem:[%s533] ss:$2 sm:$0xff] %v525
        %v535 = vld.sshfl [vmem:[#allocation1] sm:$0xff pattern:$0x75316420]
        %v536 = vld.sshfl [vmem:[#allocation1 + $0x8] sm:$0xff pattern:$0x75316420]
        %v537 = vld.sshfl [vmem:[#allocation1 + $0x10] sm:$0xff pattern:$0x75316420]
        %538 = vrot.lane.b32.xlu0 %v535, 111
        %v539 = vpop.permute.xlu0 %538
        %540 = vrot.lane.b32.xlu0 %v536, 111
        %v541 = vpop.permute.xlu0 %540
        %542 = vrot.lane.b32.xlu0 %v537, 111
        %v543 = vpop.permute.xlu0 %542
        %vm544 = vcmask 908288
        %v545 = vsel %vm544, %v539, %v541
        %v546 = vsel %vm544, %v541, %v543
        %v549 = vmul.f32 %v528, %v545
        %v550 = vmul.f32 %v528, %v546
        %v551 = vadd.f32 %v464, %v549
        %v552 = vadd.f32 %v465, %v550
        %v553 = vld [vmem:[#allocation2] sm:$0xff]
        %v554 = vld [vmem:[#allocation2 + $0x8] sm:$0xf]
        %555 = vset.pattern.permute.xlu0 5
        %556 = vperm.xlu0 %555, %v400
        %v557 = vpop.permute.xlu0 %556
        %561 = vst [vmem:[#allocation1] ss:$2 sm:$0xff] %v553
        %s562 = scalar_lea.vmem [#allocation1], 16
        %563 = vst [vmem:[%s562] ss:$2 sm:$0xff] %v554
        %v564 = vld.sshfl [vmem:[#allocation1] sm:$0xff pattern:$0x75316420]
        %v565 = vld.sshfl [vmem:[#allocation1 + $0x8] sm:$0xff pattern:$0x75316420]
        %v566 = vld.sshfl [vmem:[#allocation1 + $0x10] sm:$0xff pattern:$0x75316420]
        %567 = vrot.lane.b32.xlu0 %v564, 110
        %v568 = vpop.permute.xlu0 %567
        %569 = vrot.lane.b32.xlu0 %v565, 110
        %v570 = vpop.permute.xlu0 %569
        %571 = vrot.lane.b32.xlu0 %v566, 110
        %v572 = vpop.permute.xlu0 %571
        %vm573 = vcmask 900096
        %v574 = vsel %vm573, %v568, %v570
        %v575 = vsel %vm573, %v570, %v572
        %v578 = vmul.f32 %v557, %v574
        %v579 = vmul.f32 %v557, %v575
        %v580 = vadd.f32 %v493, %v578
        %v581 = vadd.f32 %v494, %v579
        %v582 = vld [vmem:[#allocation2] sm:$0xff]
        %v583 = vld [vmem:[#allocation2 + $0x8] sm:$0xf]
        %584 = vset.pattern.permute.xlu0 6
        %585 = vperm.xlu0 %584, %v400
        %v586 = vpop.permute.xlu0 %585
        %590 = vst [vmem:[#allocation1] ss:$2 sm:$0xff] %v582
        %s591 = scalar_lea.vmem [#allocation1], 16
        %592 = vst [vmem:[%s591] ss:$2 sm:$0xff] %v583
        %v593 = vld.sshfl [vmem:[#allocation1] sm:$0xff pattern:$0x75316420]
        %v594 = vld.sshfl [vmem:[#allocation1 + $0x8] sm:$0xff pattern:$0x75316420]
        %v595 = vld.sshfl [vmem:[#allocation1 + $0x10] sm:$0xff pattern:$0x75316420]
        %596 = vrot.lane.b32.xlu0 %v593, 96
        %v597 = vpop.permute.xlu0 %596
        %598 = vrot.lane.b32.xlu0 %v594, 96
        %v599 = vpop.permute.xlu0 %598
        %600 = vrot.lane.b32.xlu0 %v595, 96
        %v601 = vpop.permute.xlu0 %600
        %vm602 = vcmask 785408
        %v603 = vsel %vm602, %v597, %v599
        %v604 = vsel %vm602, %v599, %v601
        %v607 = vmul.f32 %v586, %v603
        %v608 = vmul.f32 %v586, %v604
        %v609 = vadd.f32 %v522, %v607
        %v610 = vadd.f32 %v523, %v608
        %v611 = vld [vmem:[#allocation2] sm:$0xff]
        %v612 = vld [vmem:[#allocation2 + $0x8] sm:$0xf]
        %613 = vset.pattern.permute.xlu0 7
        %614 = vperm.xlu0 %613, %v400
        %v615 = vpop.permute.xlu0 %614
        %619 = vst [vmem:[#allocation1] ss:$2 sm:$0xff] %v611
        %s620 = scalar_lea.vmem [#allocation1], 16
        %621 = vst [vmem:[%s620] ss:$2 sm:$0xff] %v612
        %v622 = vld.sshfl [vmem:[#allocation1] sm:$0xff pattern:$0x75316420]
        %v623 = vld.sshfl [vmem:[#allocation1 + $0x8] sm:$0xff pattern:$0x75316420]
        %v624 = vld.sshfl [vmem:[#allocation1 + $0x10] sm:$0xff pattern:$0x75316420]
        %625 = vrot.lane.b32.xlu0 %v622, 95
        %v626 = vpop.permute.xlu0 %625
        %627 = vrot.lane.b32.xlu0 %v623, 95
        %v628 = vpop.permute.xlu0 %627
        %629 = vrot.lane.b32.xlu0 %v624, 95
        %v630 = vpop.permute.xlu0 %629
        %vm631 = vcmask 777216
        %v632 = vsel %vm631, %v626, %v628
        %v633 = vsel %vm631, %v628, %v630
        %v636 = vmul.f32 %v615, %v632
        %v637 = vmul.f32 %v615, %v633
        %v638 = vadd.f32 %v551, %v636
        %v639 = vadd.f32 %v552, %v637
        %v640 = vld [vmem:[#allocation2] sm:$0xff]
        %v641 = vld [vmem:[#allocation2 + $0x8] sm:$0xf]
        %642 = vset.pattern.permute.xlu0 8
        %643 = vperm.xlu0 %642, %v400
        %v644 = vpop.permute.xlu0 %643
        %648 = vst [vmem:[#allocation1] ss:$2 sm:$0xff] %v640
        %s649 = scalar_lea.vmem [#allocation1], 16
        %650 = vst [vmem:[%s649] ss:$2 sm:$0xff] %v641
        %v651 = vld.sshfl [vmem:[#allocation1] sm:$0xff pattern:$0x75316420]
        %v652 = vld.sshfl [vmem:[#allocation1 + $0x8] sm:$0xff pattern:$0x75316420]
        %v653 = vld.sshfl [vmem:[#allocation1 + $0x10] sm:$0xff pattern:$0x75316420]
        %654 = vrot.lane.b32.xlu0 %v651, 94
        %v655 = vpop.permute.xlu0 %654
        %656 = vrot.lane.b32.xlu0 %v652, 94
        %v657 = vpop.permute.xlu0 %656
        %658 = vrot.lane.b32.xlu0 %v653, 94
        %v659 = vpop.permute.xlu0 %658
        %vm660 = vcmask 769024
        %v661 = vsel %vm660, %v655, %v657
        %v662 = vsel %vm660, %v657, %v659
        %v665 = vmul.f32 %v644, %v661
        %v666 = vmul.f32 %v644, %v662
        %v667 = vadd.f32 %v580, %v665
        %v668 = vadd.f32 %v581, %v666
        %v669 = vmul.f32 %v609, %v328
        %v670 = vmul.f32 %v610, %v329
        %v671 = vadd.f32 %v669, %v638
        %v672 = vadd.f32 %v670, %v639
        %v673 = vmul.f32 %v667, %v334
        %v674 = vmul.f32 %v668, %v335
        %v675 = vadd.f32 %v671, %v673
        %v676 = vadd.f32 %v672, %v674
        %v677 = vld [vmem:[%s4] sm:$0xf]
        %679 = vset.pattern.permute.xlu0 0
        %680 = vperm.xlu0 %679, %v677
        %v681 = vpop.permute.xlu0 %680
        %v683 = vadd.f32 %v675, %v681
        %v684 = vadd.f32 %v676, %v681
        %v685 = vld [vmem:[%s5] sm:$0xf]
        %v686 = vld [vmem:[%s6] sm:$0xf]
        %688 = vset.pattern.permute.xlu0 0
        %689 = vperm.xlu0 %688, %v686
        %v690 = vpop.permute.xlu0 %689
        %v693 = vsel %vm349, %v685, 0
        %v696 = vsel %vm353, %v683, 0
        %v699 = vsel %vm353, %v684, 0
        %701 = vmatpush.msra.mxu0 0.0
        %702 = vmatpush.msra.mxu0 0.0
        %703 = vmatpush.msra.mxu0 0.0
        %704 = vmatpush.msra.mxu0 0.0
        %705 = vmatpush.msra.mxu0 0.0
        %706 = vmatpush.msra.mxu0 0.0
        %707 = vmatpush.msra.mxu0 0.0
        %708 = vmatpush.msra.mxu0 0.0
        %709 = vmatpush.msra.mxu0 0.0
        %710 = vmatpush.msra.mxu0 0.0
        %711 = vmatpush.msra.mxu0 0.0
        %712 = vmatpush.msra.mxu0 0.0
        %713 = vmatpush.msra.mxu0 0.0
        %714 = vmatpush.msra.mxu0 0.0
        %715 = vmatpush.msra.mxu0 0.0
        %716 = vmatpush.msra.mxu0 %v696
        %717 = vmatmul.f32.gmra.mxu0 %v693
        %v718 = vpop.f32.mrf.mxu0
        %v719 = vadd.f32 %v690, %v718
        %720 = vdwg.mxu0
        %721 = vmatpush.msra.mxu0 0.0
        %722 = vmatpush.msra.mxu0 0.0
        %723 = vmatpush.msra.mxu0 0.0
        %724 = vmatpush.msra.mxu0 0.0
        %725 = vmatpush.msra.mxu0 0.0
        %726 = vmatpush.msra.mxu0 0.0
        %727 = vmatpush.msra.mxu0 0.0
        %728 = vmatpush.msra.mxu0 0.0
        %729 = vmatpush.msra.mxu0 0.0
        %730 = vmatpush.msra.mxu0 0.0
        %731 = vmatpush.msra.mxu0 0.0
        %732 = vmatpush.msra.mxu0 0.0
        %733 = vmatpush.msra.mxu0 0.0
        %734 = vmatpush.msra.mxu0 0.0
        %735 = vmatpush.msra.mxu0 0.0
        %736 = vmatpush.msra.mxu0 %v699
        %737 = vmatmul.f32.gmra.mxu0 %v693
        %v738 = vpop.f32.mrf.mxu0
        %v739 = vadd.f32 %v690, %v738
        %740 = vdwg.mxu0
        %v741 = vmax.f32 %v719, 0.0
        %v742 = vmax.f32 %v739, 0.0
        %v745 = vrot.slane %v742, 4
        %v746 = vsel %vm353, %v336, %v348
        %v747 = vsel %vm353, %v741, %v745
        %750 = vst [vmem:[%s296] sm:$0xff] %v746
        %751 = vst [vmem:[%s296 + $0x8] sm:$0xff] %v747
        %s752 = sand.u32 %s184, 1
        %s753 = scalar_lea.sflag [#allocation5], %s752
        %s754 = sand.u32 %s184, 1
        %s755 = smul.addr %s754, 16
        %s756 = scalar_lea.vmem [#allocation6], %s755
        // Predicated region
        $region53: #{tpu_custom_call.1} parent=47 // pred_check
          %p757 = pneg %p194
        $region54: #{tpu_custom_call.1} parent=47 // pred_check_branch
          %759 = sbr.rel (%p757) target = $region56
        $region55: #{tpu_custom_call.1} parent=47 // pred_region
          %761 = vsyncadd %s753, 0
          %s762 = smul.addr %s24, 4
          %s763 = smul.addr %s762, 4
          %s764 = scalar_lea.hbm %s7, %s763
          %s766 = sshll.u32 %s756, 4
          %s767 = int_to_ptr.vmem [resolvable:$true] %s766
          %s768 = sshll.u32 %s764, 4
          %s769 = int_to_ptr.hbm [resolvable:$true] %s768
          %771 = dma.vmem_to_hbm [thread:$0]  %s767, 256, %s769, %s753
        $region56: #{tpu_custom_call.1} parent=47 // pred_fallthru
          _
      $region48: #{tpu_custom_call.1} parent=5 // pred_fallthru
        _
      %p772 = scmp.le.s32.totalorder 2, %s19
      // Predicated region
      $region57: #{tpu_custom_call.1} parent=5 // pred_check
        %p773 = pneg %p772
      $region58: #{tpu_custom_call.1} parent=5 // pred_check_branch
        %775 = sbr.rel (%p773) target = $region60
      $region59: #{tpu_custom_call.1} parent=5 // pred_region
        %s776 = ssub.s32 %s19, 2
        // Predicated region
        $region61: #{tpu_custom_call.1} parent=59 // pred_check
          %p777 = pneg %p200
        $region62: #{tpu_custom_call.1} parent=59 // pred_check_branch
          %779 = sbr.rel (%p777) target = $region64
        $region63: #{tpu_custom_call.1} parent=59 // pred_region
          %s780 = sand.u32 %s185, 1
          %s781 = scalar_lea.sflag [#allocation5], %s780
          %s782 = sand.u32 %s185, 1
          %s783 = smul.addr %s782, 16
          %s784 = scalar_lea.vmem [#allocation6], %s783
          %786 = dma.done %s781, 256
        $region64: #{tpu_custom_call.1} parent=59 // pred_fallthru
          _
      $region60: #{tpu_custom_call.1} parent=5 // pred_fallthru
        _
    $region6: #{tpu_custom_call.1} parent=1 // loop_footer
      %s23 = sadd.s32 1, %s19
    $region7: #{tpu_custom_call.1} parent=1 // loop_footer_branch
      %18 = sbr.rel target = $region3
    $region8: #{tpu_custom_call.1} parent=1 // loop_exit
      _
    %787 = vsyncpa [#allocation4], 1
    %s788 = scalar_lea.sflag [#allocation4], 1
    %789 = vsyncpa %s788, 1
    %790 = vsyncpa [#allocation5], 1
    %s791 = scalar_lea.sflag [#allocation5], 1
    %792 = vsyncpa %s791, 1

</llo_original>
